<compile_context>
chip_gen: v7x
topology: tpu7x:2x2x1
jax: 0.10.0
libtpu: 0.0.40
codegen_flags: <defaults>
</compile_context>

<pallas_src>
import functools

import jax
import jax.numpy as jnp
from jax.experimental import pallas as pl
from jax.experimental.pallas import tpu as pltpu


def _tagger_kernel(x_ref, w_ih_ref, w_hh_ref, b_ref, w_out_ref, b_out_ref,
                   out_ref, h_all_ref, *, seq_len, batch):
    """Single-shot LSTM + Linear.

    x_ref:     (S*B, E)    bf16, time-major flattened input (row = t*B + b)
    w_ih_ref:  (E, 4H)     bf16, W_ih^T
    w_hh_ref:  (H, 4H)     bf16, W_hh^T
    b_ref:     (1, 4H)     f32,  b_ih + b_hh
    w_out_ref: (H, O_pad)  bf16, W_out^T zero-padded to lane-dense width
    b_out_ref: (1, O_pad)  f32
    out_ref:   (S*B, O_pad) f32
    h_all_ref: (S*B, H)    f32 VMEM scratch for the hidden states
    """
    S = seq_len
    B = batch
    H = w_hh_ref.shape[0]

    # ---- Hoisted non-recurrent projection: one bf16 MXU push for all time
    # ---- steps, bias broadcast materialized exactly once (f32 accumulate).
    gates_x = (jnp.dot(x_ref[...], w_ih_ref[...],
                       preferred_element_type=jnp.float32)
               + b_ref[...])                                    # (S*B, 4H) f32

    w_hh = w_hh_ref[...]                                        # (H, 4H) bf16

    # ---- Recurrence: fully unrolled, static indices only. PyTorch default
    # ---- initial state h0 = c0 = 0; gate order i, f, g, o.
    h = jnp.zeros((B, H), jnp.float32)
    c = jnp.zeros((B, H), jnp.float32)
    for t in range(S):
        g = gates_x[t * B:(t + 1) * B, :] + jnp.dot(
            h.astype(w_hh.dtype), w_hh,
            preferred_element_type=jnp.float32)                 # (B, 4H) f32
        # Two full-vreg EUP pushes instead of four quarter-width ones.
        sg = jax.nn.sigmoid(g)
        tg = jnp.tanh(g)
        i_g = sg[:, 0 * H:1 * H]
        f_g = sg[:, 1 * H:2 * H]
        g_g = tg[:, 2 * H:3 * H]
        o_g = sg[:, 3 * H:4 * H]
        c = f_g * c + i_g * g_g
        h = o_g * jnp.tanh(c)
        # Per-step static store (8 sublane-aligned rows) into the scratch;
        # hides in the vst slot, avoids an epilogue concat shuffle.
        h_all_ref[t * B:(t + 1) * B, :] = h

    # ---- Deferred output projection: one bf16 matmul + one lane-dense store.
    h_all = h_all_ref[...].astype(w_out_ref.dtype)              # (S*B, H) bf16
    out_ref[...] = (jnp.dot(h_all, w_out_ref[...],
                            preferred_element_type=jnp.float32)
                    + b_out_ref[...]).astype(out_ref.dtype)


def tagger_forward(x, params):
    """x: (B, S, E) float32.  Returns (B, S, O) float32."""
    B, S, E = x.shape
    w_ih = params["w_ih"]      # (E, 4H)
    w_hh = params["w_hh"]      # (H, 4H)
    b = params["b"]            # (1, 4H)  (= b_ih + b_hh)
    w_out = params["w_out"]    # (H, O)
    b_out = params["b_out"]    # (1, O)
    H = w_hh.shape[0]
    O = w_out.shape[1]

    # Pad batch up to the f32 sublane count (8): same per-step latency, no
    # masked-row waste. Padded rows see zero inputs and are sliced off below.
    B_pad = max(8, ((B + 7) // 8) * 8)
    if B_pad != B:
        x = jnp.pad(x, ((0, B_pad - B), (0, 0), (0, 0)))

    # Zero-pad the output projection to a lane-dense width (multiple of 128)
    # so the single output store is unmasked. Sliced back below.
    O_pad = ((O + 127) // 128) * 128
    if O_pad != O:
        w_out = jnp.pad(w_out, ((0, 0), (0, O_pad - O)))
        b_out = jnp.pad(b_out, ((0, 0), (0, O_pad - O)))

    # bf16 matmul operands (single-pass MXU); biases and accumulation stay f32.
    w_ih_bf = w_ih.astype(jnp.bfloat16)
    w_hh_bf = w_hh.astype(jnp.bfloat16)
    w_out_bf = w_out.astype(jnp.bfloat16)

    # Layout plumbing in XLA: time-major flatten so rows are ordered t*B + b.
    x_tm = jnp.swapaxes(x, 0, 1).reshape(S * B_pad, E).astype(jnp.bfloat16)

    vmem = pl.BlockSpec(memory_space=pltpu.MemorySpace.VMEM)
    out_tm = pl.pallas_call(
        functools.partial(_tagger_kernel, seq_len=S, batch=B_pad),
        out_shape=jax.ShapeDtypeStruct((S * B_pad, O_pad), jnp.float32),
        in_specs=[vmem] * 6,
        out_specs=vmem,
        scratch_shapes=[pltpu.VMEM((S * B_pad, H), jnp.float32)],
    )(x_tm, w_ih_bf, w_hh_bf, b, w_out_bf, b_out)

    out = jnp.swapaxes(out_tm.reshape(S, B_pad, O_pad), 0, 1)   # (B_pad, S, O_pad)
    return out[:B, :, :O]


def make_params(key, comp_emb_dim, rnn_dim, output_dim):
    """Deterministic synthetic parameters, PyTorch-convention shapes then pre-transposed."""
    ks = jax.random.split(key, 6)
    scale = 0.1
    # PyTorch shapes: weight_ih (4H, E), weight_hh (4H, H), bias_* (4H,)
    w_ih_t = scale * jax.random.normal(ks[0], (4 * rnn_dim, comp_emb_dim), jnp.float32)
    w_hh_t = scale * jax.random.normal(ks[1], (4 * rnn_dim, rnn_dim), jnp.float32)
    b_ih = scale * jax.random.normal(ks[2], (4 * rnn_dim,), jnp.float32)
    b_hh = scale * jax.random.normal(ks[3], (4 * rnn_dim,), jnp.float32)
    w_out_t = scale * jax.random.normal(ks[4], (output_dim, rnn_dim), jnp.float32)
    b_out = scale * jax.random.normal(ks[5], (output_dim,), jnp.float32)
    return {
        "w_ih": w_ih_t.T,                       # (E, 4H)
        "w_hh": w_hh_t.T,                       # (H, 4H)
        "b": (b_ih + b_hh)[None, :],            # (1, 4H)
        "w_out": w_out_t.T,                     # (H, O)
        "b_out": b_out[None, :],                # (1, O)
    }


def tagger_reference(x, params):
    """Pure-JAX f32 reference (lax.scan LSTM) for correctness checking."""
    B, S, E = x.shape
    H = params["w_hh"].shape[0]

    def step(carry, x_t):
        h, c = carry
        gates = x_t @ params["w_ih"] + h @ params["w_hh"] + params["b"]
        i = jax.nn.sigmoid(gates[:, 0 * H:1 * H])
        f = jax.nn.sigmoid(gates[:, 1 * H:2 * H])
        g = jnp.tanh(gates[:, 2 * H:3 * H])
        o = jax.nn.sigmoid(gates[:, 3 * H:4 * H])
        c = f * c + i * g
        h = o * jnp.tanh(c)
        return (h, c), h

    h0 = jnp.zeros((B, H), jnp.float32)
    c0 = jnp.zeros((B, H), jnp.float32)
    _, hs = jax.lax.scan(step, (h0, c0), jnp.swapaxes(x, 0, 1))  # (S, B, H)
    hs = jnp.swapaxes(hs, 0, 1)                                  # (B, S, H)
    return hs @ params["w_out"] + params["b_out"]


if __name__ == "__main__":
    # Small shapes consistent with the module's forward:
    batch, seq, comp_emb_dim, rnn_dim, output_dim = 2, 8, 32, 32, 16

    key = jax.random.PRNGKey(0)
    kx, kp = jax.random.split(key)
    x = jax.random.normal(kx, (batch, seq, comp_emb_dim), jnp.float32)
    params = make_params(kp, comp_emb_dim, rnn_dim, output_dim)

    out = tagger_forward(x, params)
    out = jax.block_until_ready(out)

    ref = jax.block_until_ready(tagger_reference(x, params))
    assert out.shape == (batch, seq, output_dim)
    # Tolerance loosened vs the f32 reference because matmul operands are bf16
    # (MXU-native single-pass); accumulation and state math remain f32.
    assert jnp.allclose(out, ref, atol=5e-2, rtol=5e-2), "mismatch vs reference"

    print("KERNEL_OK")
</pallas_src>

<mosaic_0001>
module attributes {stable_mosaic.version = 11 : i64} {
  func.func @_tagger_kernel(%arg0: memref<64x32xbf16, #tpu.memory_space<vmem>>, %arg1: memref<32x128xbf16, #tpu.memory_space<vmem>>, %arg2: memref<32x128xbf16, #tpu.memory_space<vmem>>, %arg3: memref<1x128xf32, #tpu.memory_space<vmem>>, %arg4: memref<32x128xbf16, #tpu.memory_space<vmem>>, %arg5: memref<1x128xf32, #tpu.memory_space<vmem>>, %arg6: memref<64x128xf32, #tpu.memory_space<vmem>>, %arg7: memref<64x32xf32, #tpu.memory_space<vmem>>) attributes {dimension_semantics = [], scalar_prefetch = 0 : i64, scratch_operands = 1 : i64, tpu.core_type = #tpu.core_type<tc>} {
    %c0 = arith.constant 0 : index
    %c0_0 = arith.constant 0 : index
    %0 = vector.load %arg0[%c0, %c0_0] : memref<64x32xbf16, #tpu.memory_space<vmem>>, vector<64x32xbf16>
    %c0_1 = arith.constant 0 : index
    %c0_2 = arith.constant 0 : index
    %1 = vector.load %arg1[%c0_1, %c0_2] : memref<32x128xbf16, #tpu.memory_space<vmem>>, vector<32x128xbf16>
    %cst = arith.constant dense<0.000000e+00> : vector<64x128xf32>
    %2 = tpu.matmul %0, %1, %cst {dimension_numbers = #tpu.dot_dimension_numbers<[1], [0], [0], [1], [0, 0, 1, 1], [], []>} : vector<64x32xbf16>, vector<32x128xbf16>, vector<64x128xf32> -> vector<64x128xf32>
    %c0_3 = arith.constant 0 : index
    %c0_4 = arith.constant 0 : index
    %3 = vector.load %arg3[%c0_3, %c0_4] : memref<1x128xf32, #tpu.memory_space<vmem>>, vector<1x128xf32>
    %4 = vector.broadcast %3 : vector<1x128xf32> to vector<64x128xf32>
    %5 = arith.addf %2, %4 : vector<64x128xf32>
    %c0_5 = arith.constant 0 : index
    %c0_6 = arith.constant 0 : index
    %6 = vector.load %arg2[%c0_5, %c0_6] : memref<32x128xbf16, #tpu.memory_space<vmem>>, vector<32x128xbf16>
    %cst_7 = arith.constant 0.000000e+00 : f32
    %7 = vector.broadcast %cst_7 : f32 to vector<8x32xf32>
    %cst_8 = arith.constant 0.000000e+00 : f32
    %8 = vector.broadcast %cst_8 : f32 to vector<8x32xf32>
    %9 = vector.extract_strided_slice %5 {offsets = [0, 0], sizes = [8, 128], strides = [1, 1]} : vector<64x128xf32> to vector<8x128xf32>
    %10 = arith.truncf %7 : vector<8x32xf32> to vector<8x32xbf16>
    %cst_9 = arith.constant dense<0.000000e+00> : vector<8x128xf32>
    %11 = tpu.matmul %10, %6, %cst_9 {dimension_numbers = #tpu.dot_dimension_numbers<[1], [0], [0], [1], [0, 0, 1, 1], [], []>} : vector<8x32xbf16>, vector<32x128xbf16>, vector<8x128xf32> -> vector<8x128xf32>
    %12 = arith.addf %9, %11 : vector<8x128xf32>
    %13 = arith.negf %12 : vector<8x128xf32>
    %14 = math.exp %13 : vector<8x128xf32>
    %cst_10 = arith.constant 1.000000e+00 : f32
    %15 = vector.broadcast %cst_10 : f32 to vector<8x128xf32>
    %16 = arith.addf %15, %14 : vector<8x128xf32>
    %17 = arith.divf %15, %16 : vector<8x128xf32>
    %18 = math.tanh %12 : vector<8x128xf32>
    %19 = vector.extract_strided_slice %17 {offsets = [0, 0], sizes = [8, 32], strides = [1, 1]} : vector<8x128xf32> to vector<8x32xf32>
    %20 = vector.extract_strided_slice %17 {offsets = [0, 32], sizes = [8, 32], strides = [1, 1]} : vector<8x128xf32> to vector<8x32xf32>
    %21 = vector.extract_strided_slice %18 {offsets = [0, 64], sizes = [8, 32], strides = [1, 1]} : vector<8x128xf32> to vector<8x32xf32>
    %22 = vector.extract_strided_slice %17 {offsets = [0, 96], sizes = [8, 32], strides = [1, 1]} : vector<8x128xf32> to vector<8x32xf32>
    %23 = arith.mulf %20, %8 : vector<8x32xf32>
    %24 = arith.mulf %19, %21 : vector<8x32xf32>
    %25 = arith.addf %23, %24 : vector<8x32xf32>
    %26 = math.tanh %25 : vector<8x32xf32>
    %27 = arith.mulf %22, %26 : vector<8x32xf32>
    %c0_11 = arith.constant 0 : index
    %c0_12 = arith.constant 0 : index
    %28 = vector.load %arg7[%c0_11, %c0_12] : memref<64x32xf32, #tpu.memory_space<vmem>>, vector<8x32xf32>
    tpu.vector_store %arg7[%c0_11, %c0_12], %27 {strides = array<i32>} : memref<64x32xf32, #tpu.memory_space<vmem>>, vector<8x32xf32>,
    %29 = vector.extract_strided_slice %5 {offsets = [8, 0], sizes = [8, 128], strides = [1, 1]} : vector<64x128xf32> to vector<8x128xf32>
    %30 = arith.truncf %27 : vector<8x32xf32> to vector<8x32xbf16>
    %cst_13 = arith.constant dense<0.000000e+00> : vector<8x128xf32>
    %31 = tpu.matmul %30, %6, %cst_13 {dimension_numbers = #tpu.dot_dimension_numbers<[1], [0], [0], [1], [0, 0, 1, 1], [], []>} : vector<8x32xbf16>, vector<32x128xbf16>, vector<8x128xf32> -> vector<8x128xf32>
    %32 = arith.addf %29, %31 : vector<8x128xf32>
    %33 = arith.negf %32 : vector<8x128xf32>
    %34 = math.exp %33 : vector<8x128xf32>
    %cst_14 = arith.constant 1.000000e+00 : f32
    %35 = vector.broadcast %cst_14 : f32 to vector<8x128xf32>
    %36 = arith.addf %35, %34 : vector<8x128xf32>
    %37 = arith.divf %35, %36 : vector<8x128xf32>
    %38 = math.tanh %32 : vector<8x128xf32>
    %39 = vector.extract_strided_slice %37 {offsets = [0, 0], sizes = [8, 32], strides = [1, 1]} : vector<8x128xf32> to vector<8x32xf32>
    %40 = vector.extract_strided_slice %37 {offsets = [0, 32], sizes = [8, 32], strides = [1, 1]} : vector<8x128xf32> to vector<8x32xf32>
    %41 = vector.extract_strided_slice %38 {offsets = [0, 64], sizes = [8, 32], strides = [1, 1]} : vector<8x128xf32> to vector<8x32xf32>
    %42 = vector.extract_strided_slice %37 {offsets = [0, 96], sizes = [8, 32], strides = [1, 1]} : vector<8x128xf32> to vector<8x32xf32>
    %43 = arith.mulf %40, %25 : vector<8x32xf32>
    %44 = arith.mulf %39, %41 : vector<8x32xf32>
    %45 = arith.addf %43, %44 : vector<8x32xf32>
    %46 = math.tanh %45 : vector<8x32xf32>
    %47 = arith.mulf %42, %46 : vector<8x32xf32>
    %c8 = arith.constant 8 : index
    %c0_15 = arith.constant 0 : index
    %48 = vector.load %arg7[%c8, %c0_15] : memref<64x32xf32, #tpu.memory_space<vmem>>, vector<8x32xf32>
    tpu.vector_store %arg7[%c8, %c0_15], %47 {strides = array<i32>} : memref<64x32xf32, #tpu.memory_space<vmem>>, vector<8x32xf32>,
    %49 = vector.extract_strided_slice %5 {offsets = [16, 0], sizes = [8, 128], strides = [1, 1]} : vector<64x128xf32> to vector<8x128xf32>
    %50 = arith.truncf %47 : vector<8x32xf32> to vector<8x32xbf16>
    %cst_16 = arith.constant dense<0.000000e+00> : vector<8x128xf32>
    %51 = tpu.matmul %50, %6, %cst_16 {dimension_numbers = #tpu.dot_dimension_numbers<[1], [0], [0], [1], [0, 0, 1, 1], [], []>} : vector<8x32xbf16>, vector<32x128xbf16>, vector<8x128xf32> -> vector<8x128xf32>
    %52 = arith.addf %49, %51 : vector<8x128xf32>
    %53 = arith.negf %52 : vector<8x128xf32>
    %54 = math.exp %53 : vector<8x128xf32>
    %cst_17 = arith.constant 1.000000e+00 : f32
    %55 = vector.broadcast %cst_17 : f32 to vector<8x128xf32>
    %56 = arith.addf %55, %54 : vector<8x128xf32>
    %57 = arith.divf %55, %56 : vector<8x128xf32>
    %58 = math.tanh %52 : vector<8x128xf32>
    %59 = vector.extract_strided_slice %57 {offsets = [0, 0], sizes = [8, 32], strides = [1, 1]} : vector<8x128xf32> to vector<8x32xf32>
    %60 = vector.extract_strided_slice %57 {offsets = [0, 32], sizes = [8, 32], strides = [1, 1]} : vector<8x128xf32> to vector<8x32xf32>
    %61 = vector.extract_strided_slice %58 {offsets = [0, 64], sizes = [8, 32], strides = [1, 1]} : vector<8x128xf32> to vector<8x32xf32>
    %62 = vector.extract_strided_slice %57 {offsets = [0, 96], sizes = [8, 32], strides = [1, 1]} : vector<8x128xf32> to vector<8x32xf32>
    %63 = arith.mulf %60, %45 : vector<8x32xf32>
    %64 = arith.mulf %59, %61 : vector<8x32xf32>
    %65 = arith.addf %63, %64 : vector<8x32xf32>
    %66 = math.tanh %65 : vector<8x32xf32>
    %67 = arith.mulf %62, %66 : vector<8x32xf32>
    %c16 = arith.constant 16 : index
    %c0_18 = arith.constant 0 : index
    %68 = vector.load %arg7[%c16, %c0_18] : memref<64x32xf32, #tpu.memory_space<vmem>>, vector<8x32xf32>
    tpu.vector_store %arg7[%c16, %c0_18], %67 {strides = array<i32>} : memref<64x32xf32, #tpu.memory_space<vmem>>, vector<8x32xf32>,
    %69 = vector.extract_strided_slice %5 {offsets = [24, 0], sizes = [8, 128], strides = [1, 1]} : vector<64x128xf32> to vector<8x128xf32>
    %70 = arith.truncf %67 : vector<8x32xf32> to vector<8x32xbf16>
    %cst_19 = arith.constant dense<0.000000e+00> : vector<8x128xf32>
    %71 = tpu.matmul %70, %6, %cst_19 {dimension_numbers = #tpu.dot_dimension_numbers<[1], [0], [0], [1], [0, 0, 1, 1], [], []>} : vector<8x32xbf16>, vector<32x128xbf16>, vector<8x128xf32> -> vector<8x128xf32>
    %72 = arith.addf %69, %71 : vector<8x128xf32>
    %73 = arith.negf %72 : vector<8x128xf32>
    %74 = math.exp %73 : vector<8x128xf32>
    %cst_20 = arith.constant 1.000000e+00 : f32
    %75 = vector.broadcast %cst_20 : f32 to vector<8x128xf32>
    %76 = arith.addf %75, %74 : vector<8x128xf32>
    %77 = arith.divf %75, %76 : vector<8x128xf32>
    %78 = math.tanh %72 : vector<8x128xf32>
    %79 = vector.extract_strided_slice %77 {offsets = [0, 0], sizes = [8, 32], strides = [1, 1]} : vector<8x128xf32> to vector<8x32xf32>
    %80 = vector.extract_strided_slice %77 {offsets = [0, 32], sizes = [8, 32], strides = [1, 1]} : vector<8x128xf32> to vector<8x32xf32>
    %81 = vector.extract_strided_slice %78 {offsets = [0, 64], sizes = [8, 32], strides = [1, 1]} : vector<8x128xf32> to vector<8x32xf32>
    %82 = vector.extract_strided_slice %77 {offsets = [0, 96], sizes = [8, 32], strides = [1, 1]} : vector<8x128xf32> to vector<8x32xf32>
    %83 = arith.mulf %80, %65 : vector<8x32xf32>
    %84 = arith.mulf %79, %81 : vector<8x32xf32>
    %85 = arith.addf %83, %84 : vector<8x32xf32>
    %86 = math.tanh %85 : vector<8x32xf32>
    %87 = arith.mulf %82, %86 : vector<8x32xf32>
    %c24 = arith.constant 24 : index
    %c0_21 = arith.constant 0 : index
    %88 = vector.load %arg7[%c24, %c0_21] : memref<64x32xf32, #tpu.memory_space<vmem>>, vector<8x32xf32>
    tpu.vector_store %arg7[%c24, %c0_21], %87 {strides = array<i32>} : memref<64x32xf32, #tpu.memory_space<vmem>>, vector<8x32xf32>,
    %89 = vector.extract_strided_slice %5 {offsets = [32, 0], sizes = [8, 128], strides = [1, 1]} : vector<64x128xf32> to vector<8x128xf32>
    %90 = arith.truncf %87 : vector<8x32xf32> to vector<8x32xbf16>
    %cst_22 = arith.constant dense<0.000000e+00> : vector<8x128xf32>
    %91 = tpu.matmul %90, %6, %cst_22 {dimension_numbers = #tpu.dot_dimension_numbers<[1], [0], [0], [1], [0, 0, 1, 1], [], []>} : vector<8x32xbf16>, vector<32x128xbf16>, vector<8x128xf32> -> vector<8x128xf32>
    %92 = arith.addf %89, %91 : vector<8x128xf32>
    %93 = arith.negf %92 : vector<8x128xf32>
    %94 = math.exp %93 : vector<8x128xf32>
    %cst_23 = arith.constant 1.000000e+00 : f32
    %95 = vector.broadcast %cst_23 : f32 to vector<8x128xf32>
    %96 = arith.addf %95, %94 : vector<8x128xf32>
    %97 = arith.divf %95, %96 : vector<8x128xf32>
    %98 = math.tanh %92 : vector<8x128xf32>
    %99 = vector.extract_strided_slice %97 {offsets = [0, 0], sizes = [8, 32], strides = [1, 1]} : vector<8x128xf32> to vector<8x32xf32>
    %100 = vector.extract_strided_slice %97 {offsets = [0, 32], sizes = [8, 32], strides = [1, 1]} : vector<8x128xf32> to vector<8x32xf32>
    %101 = vector.extract_strided_slice %98 {offsets = [0, 64], sizes = [8, 32], strides = [1, 1]} : vector<8x128xf32> to vector<8x32xf32>
    %102 = vector.extract_strided_slice %97 {offsets = [0, 96], sizes = [8, 32], strides = [1, 1]} : vector<8x128xf32> to vector<8x32xf32>
    %103 = arith.mulf %100, %85 : vector<8x32xf32>
    %104 = arith.mulf %99, %101 : vector<8x32xf32>
    %105 = arith.addf %103, %104 : vector<8x32xf32>
    %106 = math.tanh %105 : vector<8x32xf32>
    %107 = arith.mulf %102, %106 : vector<8x32xf32>
    %c32 = arith.constant 32 : index
    %c0_24 = arith.constant 0 : index
    %108 = vector.load %arg7[%c32, %c0_24] : memref<64x32xf32, #tpu.memory_space<vmem>>, vector<8x32xf32>
    tpu.vector_store %arg7[%c32, %c0_24], %107 {strides = array<i32>} : memref<64x32xf32, #tpu.memory_space<vmem>>, vector<8x32xf32>,
    %109 = vector.extract_strided_slice %5 {offsets = [40, 0], sizes = [8, 128], strides = [1, 1]} : vector<64x128xf32> to vector<8x128xf32>
    %110 = arith.truncf %107 : vector<8x32xf32> to vector<8x32xbf16>
    %cst_25 = arith.constant dense<0.000000e+00> : vector<8x128xf32>
    %111 = tpu.matmul %110, %6, %cst_25 {dimension_numbers = #tpu.dot_dimension_numbers<[1], [0], [0], [1], [0, 0, 1, 1], [], []>} : vector<8x32xbf16>, vector<32x128xbf16>, vector<8x128xf32> -> vector<8x128xf32>
    %112 = arith.addf %109, %111 : vector<8x128xf32>
    %113 = arith.negf %112 : vector<8x128xf32>
    %114 = math.exp %113 : vector<8x128xf32>
    %cst_26 = arith.constant 1.000000e+00 : f32
    %115 = vector.broadcast %cst_26 : f32 to vector<8x128xf32>
    %116 = arith.addf %115, %114 : vector<8x128xf32>
    %117 = arith.divf %115, %116 : vector<8x128xf32>
    %118 = math.tanh %112 : vector<8x128xf32>
    %119 = vector.extract_strided_slice %117 {offsets = [0, 0], sizes = [8, 32], strides = [1, 1]} : vector<8x128xf32> to vector<8x32xf32>
    %120 = vector.extract_strided_slice %117 {offsets = [0, 32], sizes = [8, 32], strides = [1, 1]} : vector<8x128xf32> to vector<8x32xf32>
    %121 = vector.extract_strided_slice %118 {offsets = [0, 64], sizes = [8, 32], strides = [1, 1]} : vector<8x128xf32> to vector<8x32xf32>
    %122 = vector.extract_strided_slice %117 {offsets = [0, 96], sizes = [8, 32], strides = [1, 1]} : vector<8x128xf32> to vector<8x32xf32>
    %123 = arith.mulf %120, %105 : vector<8x32xf32>
    %124 = arith.mulf %119, %121 : vector<8x32xf32>
    %125 = arith.addf %123, %124 : vector<8x32xf32>
    %126 = math.tanh %125 : vector<8x32xf32>
    %127 = arith.mulf %122, %126 : vector<8x32xf32>
    %c40 = arith.constant 40 : index
    %c0_27 = arith.constant 0 : index
    %128 = vector.load %arg7[%c40, %c0_27] : memref<64x32xf32, #tpu.memory_space<vmem>>, vector<8x32xf32>
    tpu.vector_store %arg7[%c40, %c0_27], %127 {strides = array<i32>} : memref<64x32xf32, #tpu.memory_space<vmem>>, vector<8x32xf32>,
    %129 = vector.extract_strided_slice %5 {offsets = [48, 0], sizes = [8, 128], strides = [1, 1]} : vector<64x128xf32> to vector<8x128xf32>
    %130 = arith.truncf %127 : vector<8x32xf32> to vector<8x32xbf16>
    %cst_28 = arith.constant dense<0.000000e+00> : vector<8x128xf32>
    %131 = tpu.matmul %130, %6, %cst_28 {dimension_numbers = #tpu.dot_dimension_numbers<[1], [0], [0], [1], [0, 0, 1, 1], [], []>} : vector<8x32xbf16>, vector<32x128xbf16>, vector<8x128xf32> -> vector<8x128xf32>
    %132 = arith.addf %129, %131 : vector<8x128xf32>
    %133 = arith.negf %132 : vector<8x128xf32>
    %134 = math.exp %133 : vector<8x128xf32>
    %cst_29 = arith.constant 1.000000e+00 : f32
    %135 = vector.broadcast %cst_29 : f32 to vector<8x128xf32>
    %136 = arith.addf %135, %134 : vector<8x128xf32>
    %137 = arith.divf %135, %136 : vector<8x128xf32>
    %138 = math.tanh %132 : vector<8x128xf32>
    %139 = vector.extract_strided_slice %137 {offsets = [0, 0], sizes = [8, 32], strides = [1, 1]} : vector<8x128xf32> to vector<8x32xf32>
    %140 = vector.extract_strided_slice %137 {offsets = [0, 32], sizes = [8, 32], strides = [1, 1]} : vector<8x128xf32> to vector<8x32xf32>
    %141 = vector.extract_strided_slice %138 {offsets = [0, 64], sizes = [8, 32], strides = [1, 1]} : vector<8x128xf32> to vector<8x32xf32>
    %142 = vector.extract_strided_slice %137 {offsets = [0, 96], sizes = [8, 32], strides = [1, 1]} : vector<8x128xf32> to vector<8x32xf32>
    %143 = arith.mulf %140, %125 : vector<8x32xf32>
    %144 = arith.mulf %139, %141 : vector<8x32xf32>
    %145 = arith.addf %143, %144 : vector<8x32xf32>
    %146 = math.tanh %145 : vector<8x32xf32>
    %147 = arith.mulf %142, %146 : vector<8x32xf32>
    %c48 = arith.constant 48 : index
    %c0_30 = arith.constant 0 : index
    %148 = vector.load %arg7[%c48, %c0_30] : memref<64x32xf32, #tpu.memory_space<vmem>>, vector<8x32xf32>
    tpu.vector_store %arg7[%c48, %c0_30], %147 {strides = array<i32>} : memref<64x32xf32, #tpu.memory_space<vmem>>, vector<8x32xf32>,
    %149 = vector.extract_strided_slice %5 {offsets = [56, 0], sizes = [8, 128], strides = [1, 1]} : vector<64x128xf32> to vector<8x128xf32>
    %150 = arith.truncf %147 : vector<8x32xf32> to vector<8x32xbf16>
    %cst_31 = arith.constant dense<0.000000e+00> : vector<8x128xf32>
    %151 = tpu.matmul %150, %6, %cst_31 {dimension_numbers = #tpu.dot_dimension_numbers<[1], [0], [0], [1], [0, 0, 1, 1], [], []>} : vector<8x32xbf16>, vector<32x128xbf16>, vector<8x128xf32> -> vector<8x128xf32>
    %152 = arith.addf %149, %151 : vector<8x128xf32>
    %153 = arith.negf %152 : vector<8x128xf32>
    %154 = math.exp %153 : vector<8x128xf32>
    %cst_32 = arith.constant 1.000000e+00 : f32
    %155 = vector.broadcast %cst_32 : f32 to vector<8x128xf32>
    %156 = arith.addf %155, %154 : vector<8x128xf32>
    %157 = arith.divf %155, %156 : vector<8x128xf32>
    %158 = math.tanh %152 : vector<8x128xf32>
    %159 = vector.extract_strided_slice %157 {offsets = [0, 0], sizes = [8, 32], strides = [1, 1]} : vector<8x128xf32> to vector<8x32xf32>
    %160 = vector.extract_strided_slice %157 {offsets = [0, 32], sizes = [8, 32], strides = [1, 1]} : vector<8x128xf32> to vector<8x32xf32>
    %161 = vector.extract_strided_slice %158 {offsets = [0, 64], sizes = [8, 32], strides = [1, 1]} : vector<8x128xf32> to vector<8x32xf32>
    %162 = vector.extract_strided_slice %157 {offsets = [0, 96], sizes = [8, 32], strides = [1, 1]} : vector<8x128xf32> to vector<8x32xf32>
    %163 = arith.mulf %160, %145 : vector<8x32xf32>
    %164 = arith.mulf %159, %161 : vector<8x32xf32>
    %165 = arith.addf %163, %164 : vector<8x32xf32>
    %166 = math.tanh %165 : vector<8x32xf32>
    %167 = arith.mulf %162, %166 : vector<8x32xf32>
    %c56 = arith.constant 56 : index
    %c0_33 = arith.constant 0 : index
    %168 = vector.load %arg7[%c56, %c0_33] : memref<64x32xf32, #tpu.memory_space<vmem>>, vector<8x32xf32>
    tpu.vector_store %arg7[%c56, %c0_33], %167 {strides = array<i32>} : memref<64x32xf32, #tpu.memory_space<vmem>>, vector<8x32xf32>,
    %c0_34 = arith.constant 0 : index
    %c0_35 = arith.constant 0 : index
    %169 = vector.load %arg7[%c0_34, %c0_35] : memref<64x32xf32, #tpu.memory_space<vmem>>, vector<64x32xf32>
    %170 = arith.truncf %169 : vector<64x32xf32> to vector<64x32xbf16>
    %c0_36 = arith.constant 0 : index
    %c0_37 = arith.constant 0 : index
    %171 = vector.load %arg4[%c0_36, %c0_37] : memref<32x128xbf16, #tpu.memory_space<vmem>>, vector<32x128xbf16>
    %cst_38 = arith.constant dense<0.000000e+00> : vector<64x128xf32>
    %172 = tpu.matmul %170, %171, %cst_38 {dimension_numbers = #tpu.dot_dimension_numbers<[1], [0], [0], [1], [0, 0, 1, 1], [], []>} : vector<64x32xbf16>, vector<32x128xbf16>, vector<64x128xf32> -> vector<64x128xf32>
    %c0_39 = arith.constant 0 : index
    %c0_40 = arith.constant 0 : index
    %173 = vector.load %arg5[%c0_39, %c0_40] : memref<1x128xf32, #tpu.memory_space<vmem>>, vector<1x128xf32>
    %174 = vector.broadcast %173 : vector<1x128xf32> to vector<64x128xf32>
    %175 = arith.addf %172, %174 : vector<64x128xf32>
    %c0_41 = arith.constant 0 : index
    %c0_42 = arith.constant 0 : index
    %176 = vector.load %arg6[%c0_41, %c0_42] : memref<64x128xf32, #tpu.memory_space<vmem>>, vector<64x128xf32>
    tpu.vector_store %arg6[%c0_41, %c0_42], %175 {strides = array<i32>} : memref<64x128xf32, #tpu.memory_space<vmem>>, vector<64x128xf32>,
    return
  }
}

</mosaic_0001>

<llo_original>
// kernel: tpu_custom_call.1
$region0: #{tpu_custom_call.1}
  #allocation0 [shape = 'u32[]', space=smem, size = 0x4, offset = 0x4, fixed_abs, tag = 'smem constant byte address 0x4 - core index']
  #allocation1 [shape = 'u32[144,128]{1,0:T(1,128)}', space=vmem, size = 0x12000, scoped, tag = 'internal scratch']
  #allocation2 [shape = 'f32[64,32]{1,0:T(8,128)}', space=vmem, size = 0x8000, scoped, tag = 'scratch operand']
  %s0 = inlined_call_operand.vmem [shape: bf16[64,32], index: 0, kind: input, shape index: {}]
  %s1 = inlined_call_operand.vmem [shape: bf16[32,128], index: 1, kind: input, shape index: {}]
  %s2 = inlined_call_operand.vmem [shape: bf16[32,128], index: 2, kind: input, shape index: {}]
  %s3 = inlined_call_operand.vmem [shape: f32[1,128], index: 3, kind: input, shape index: {}]
  %s4 = inlined_call_operand.vmem [shape: bf16[32,128], index: 4, kind: input, shape index: {}]
  %s5 = inlined_call_operand.vmem [shape: f32[1,128], index: 5, kind: input, shape index: {}]
  %s6 = inlined_call_operand.hbm [shape: f32[64,128], index: 6, kind: output, shape index: {}]
  %s7 = sld [smem:[#allocation0]]
  $region34: #{tpu_custom_call.1} parent=0
    _
  %s9 = ssub.s32 1, %s7
  %s10 = scalar_select 0, %s9, %s7
  $region1: #{tpu_custom_call.1} parent=0
    #allocation3 [shape = 'u8[32768]{0}', space=vmem, size = 0x8000, scoped, tag = 'output window, operand 0, single buffered']
    #allocation4 [shape = 's32[1]{0}', space=sflag, size = 0x4, scoped, tag = 'scoped memory for tpu_custom_call.1']
    %11 = vsyncpa [#allocation4], 0
    // Predicated region
    $region2: #{tpu_custom_call.1} parent=1 // pred_check
      _
    $region3: #{tpu_custom_call.1} parent=1 // pred_check_branch
      %13 = sbr.rel (0) target = $region5
    $region4: #{tpu_custom_call.1} parent=1 // pred_region
      _
    $region5: #{tpu_custom_call.1} parent=1 // pred_fallthru
      _
    // Predicated region
    $region6: #{tpu_custom_call.1} parent=1 // pred_check
      _
    $region7: #{tpu_custom_call.1} parent=1 // pred_check_branch
      %15 = sbr.rel (0) target = $region9
    $region8: #{tpu_custom_call.1} parent=1 // pred_region
      _
    $region9: #{tpu_custom_call.1} parent=1 // pred_fallthru
      _
    // Predicated region
    $region10: #{tpu_custom_call.1} parent=1 // pred_check
      _
    $region11: #{tpu_custom_call.1} parent=1 // pred_check_branch
      %17 = sbr.rel (0) target = $region13
    $region12: #{tpu_custom_call.1} parent=1 // pred_region
      _
    $region13: #{tpu_custom_call.1} parent=1 // pred_fallthru
      _
    // Predicated region
    $region14: #{tpu_custom_call.1} parent=1 // pred_check
      _
    $region15: #{tpu_custom_call.1} parent=1 // pred_check_branch
      %19 = sbr.rel (0) target = $region17
    $region16: #{tpu_custom_call.1} parent=1 // pred_region
      _
    $region17: #{tpu_custom_call.1} parent=1 // pred_fallthru
      _
    // Predicated region
    $region18: #{tpu_custom_call.1} parent=1 // pred_check
      _
    $region19: #{tpu_custom_call.1} parent=1 // pred_check_branch
      %21 = sbr.rel (0) target = $region21
    $region20: #{tpu_custom_call.1} parent=1 // pred_region
      _
    $region21: #{tpu_custom_call.1} parent=1 // pred_fallthru
      _
    // Predicated region
    $region22: #{tpu_custom_call.1} parent=1 // pred_check
      _
    $region23: #{tpu_custom_call.1} parent=1 // pred_check_branch
      %23 = sbr.rel (0) target = $region25
    $region24: #{tpu_custom_call.1} parent=1 // pred_region
      _
    $region25: #{tpu_custom_call.1} parent=1 // pred_fallthru
      _
    %v25 = vld [vmem:[%s0] sm:$0xf]
    %v26 = vld [vmem:[%s0 + $0x4] sm:$0xf]
    %v27 = vld [vmem:[%s0 + $0x8] sm:$0xf]
    %v28 = vld [vmem:[%s0 + $0xc] sm:$0xf]
    %v29 = vld [vmem:[%s0 + $0x10] sm:$0xf]
    %v30 = vld [vmem:[%s0 + $0x14] sm:$0xf]
    %v31 = vld [vmem:[%s0 + $0x18] sm:$0xf]
    %v32 = vld [vmem:[%s0 + $0x1c] sm:$0xf]
    %v33 = vld [vmem:[%s1] sm:$0xf]
    %v34 = vld [vmem:[%s1 + $0x4] sm:$0xf]
    %v35 = vld [vmem:[%s1 + $0x8] sm:$0xf]
    %v36 = vld [vmem:[%s1 + $0xc] sm:$0xf]
    %v37 = vld [vmem:[%s3] sm:$0x1]
    %v39 = vlaneseq
    %v40 = vshrl.u32 %v39, 7
    %v41 = vsub.s32 0, %v40
    %v42 = vrot.slane %v37, %v41
    %v52 = vunpack.c.l.b16 %v25
    %v53 = vunpack.c.l.b16 %v26
    %v54 = vunpack.c.l.b16 %v27
    %v55 = vunpack.c.l.b16 %v28
    %v56 = vunpack.c.l.b16 %v29
    %v57 = vunpack.c.l.b16 %v30
    %v58 = vunpack.c.l.b16 %v31
    %v59 = vunpack.c.l.b16 %v32
    %v60 = vpack.c.b16 %v53, %v52
    %v61 = vpack.c.b16 %v55, %v54
    %v62 = vpack.c.b16 %v57, %v56
    %v63 = vpack.c.b16 %v59, %v58
    %v68 = vunpack.c.l.b16 %v33
    %v69 = vunpack.c.l.b16 %v34
    %v70 = vunpack.c.l.b16 %v35
    %v71 = vunpack.c.l.b16 %v36
    %v72 = vpack.c.b16 %v69, %v68
    %v73 = vpack.c.b16 %v71, %v70
    %vm76 = vcmask 261120
    %v78 = vsel %vm76, %v60, 0
    %v81 = vsel %vm76, %v61, 0
    %v84 = vsel %vm76, %v62, 0
    %v87 = vsel %vm76, %v63, 0
    %89 = vmatprep.subr.bf16.mxu0 0
    %90 = vmatpush1.bf16.msra.mxu0 %v72
    %91 = vmatprep.subr.bf16.mxu0 0
    %92 = vmatpush1.bf16.msra.mxu0 %v73
    %93 = vmatprep.subr.bf16.mxu0 0
    %94 = vmatpush1.bf16.msra.mxu0 0
    %95 = vmatprep.subr.bf16.mxu0 0
    %96 = vmatpush1.bf16.msra.mxu0 0
    %97 = vmatprep.subr.bf16.mxu0 0
    %98 = vmatpush1.bf16.msra.mxu0 0
    %99 = vmatprep.subr.bf16.mxu0 0
    %100 = vmatpush1.bf16.msra.mxu0 0
    %101 = vmatprep.subr.bf16.mxu0 0
    %102 = vmatpush1.bf16.msra.mxu0 0
    %103 = vmatprep.subr.bf16.mxu0 0
    %104 = vmatpush1.bf16.msra.mxu0 0
    %105 = vmatprep.subr.bf16.mxu0 0
    %106 = vmatpush1.bf16.msra.mxu0 0
    %107 = vmatprep.subr.bf16.mxu0 0
    %108 = vmatpush1.bf16.msra.mxu0 0
    %109 = vmatprep.subr.bf16.mxu0 0
    %110 = vmatpush1.bf16.msra.mxu0 0
    %111 = vmatprep.subr.bf16.mxu0 0
    %112 = vmatpush1.bf16.msra.mxu0 0
    %113 = vmatprep.subr.bf16.mxu0 0
    %114 = vmatpush1.bf16.msra.mxu0 0
    %115 = vmatprep.subr.bf16.mxu0 0
    %116 = vmatpush1.bf16.msra.mxu0 0
    %117 = vmatprep.subr.bf16.mxu0 0
    %118 = vmatpush1.bf16.msra.mxu0 0
    %119 = vmatprep.subr.bf16.mxu0 0
    %120 = vmatpush1.bf16.msra.mxu0 0
    %121 = vmatprep.mubr.bf16.mxu0 0
    %122 = vmatmul.mubr.bf16.gmra.mrb[0].mxu0 %v78
    %v123 = vpop.f32.mrb[0].mxu0
    %v124 = vadd.f32 %v42, %v123
    %v125 = vpop.f32.mrb[0].mxu0
    %v126 = vpop.f32.mrb[0].mxu0
    %v127 = vadd.f32 %v42, %v126
    %v128 = vpop.f32.mrb[0].mxu0
    %129 = vmatprep.mubr.bf16.mxu0 0
    %130 = vmatmul.mubr.bf16.gmra.mrb[0].mxu0 %v81
    %v131 = vpop.f32.mrb[0].mxu0
    %v132 = vadd.f32 %v42, %v131
    %v133 = vpop.f32.mrb[0].mxu0
    %v134 = vpop.f32.mrb[0].mxu0
    %v135 = vadd.f32 %v42, %v134
    %v136 = vpop.f32.mrb[0].mxu0
    %137 = vmatprep.mubr.bf16.mxu0 0
    %138 = vmatmul.mubr.bf16.gmra.mrb[0].mxu0 %v84
    %v139 = vpop.f32.mrb[0].mxu0
    %v140 = vadd.f32 %v42, %v139
    %v141 = vpop.f32.mrb[0].mxu0
    %v142 = vpop.f32.mrb[0].mxu0
    %v143 = vadd.f32 %v42, %v142
    %v144 = vpop.f32.mrb[0].mxu0
    %145 = vmatprep.mubr.bf16.mxu0 0
    %146 = vmatmul.mubr.bf16.gmra.mrb[0].mxu0 %v87
    %v147 = vpop.f32.mrb[0].mxu0
    %v148 = vadd.f32 %v42, %v147
    %v149 = vpop.f32.mrb[0].mxu0
    %v150 = vpop.f32.mrb[0].mxu0
    %v151 = vadd.f32 %v42, %v150
    %v152 = vpop.f32.mrb[0].mxu0
    %153 = vdwg.mxu0
    %v154 = vld [vmem:[%s2] sm:$0xf]
    %v155 = vld [vmem:[%s2 + $0x4] sm:$0xf]
    %v156 = vld [vmem:[%s2 + $0x8] sm:$0xf]
    %v157 = vld [vmem:[%s2 + $0xc] sm:$0xf]
    %v162 = vunpack.c.l.b16 %v154
    %v163 = vunpack.c.l.b16 %v155
    %v164 = vunpack.c.l.b16 %v156
    %v165 = vunpack.c.l.b16 %v157
    %v166 = vpack.c.b16 %v163, %v162
    %v167 = vpack.c.b16 %v165, %v164
    %v171 = vsel %vm76, 0, 0
    %173 = vmatprep.subr.bf16.mxu0 0
    %174 = vmatpush1.bf16.msra.mxu0 %v166
    %175 = vmatprep.subr.bf16.mxu0 0
    %176 = vmatpush1.bf16.msra.mxu0 %v167
    %177 = vmatprep.subr.bf16.mxu0 0
    %178 = vmatpush1.bf16.msra.mxu0 0
    %179 = vmatprep.subr.bf16.mxu0 0
    %180 = vmatpush1.bf16.msra.mxu0 0
    %181 = vmatprep.subr.bf16.mxu0 0
    %182 = vmatpush1.bf16.msra.mxu0 0
    %183 = vmatprep.subr.bf16.mxu0 0
    %184 = vmatpush1.bf16.msra.mxu0 0
    %185 = vmatprep.subr.bf16.mxu0 0
    %186 = vmatpush1.bf16.msra.mxu0 0
    %187 = vmatprep.subr.bf16.mxu0 0
    %188 = vmatpush1.bf16.msra.mxu0 0
    %189 = vmatprep.subr.bf16.mxu0 0
    %190 = vmatpush1.bf16.msra.mxu0 0
    %191 = vmatprep.subr.bf16.mxu0 0
    %192 = vmatpush1.bf16.msra.mxu0 0
    %193 = vmatprep.subr.bf16.mxu0 0
    %194 = vmatpush1.bf16.msra.mxu0 0
    %195 = vmatprep.subr.bf16.mxu0 0
    %196 = vmatpush1.bf16.msra.mxu0 0
    %197 = vmatprep.subr.bf16.mxu0 0
    %198 = vmatpush1.bf16.msra.mxu0 0
    %199 = vmatprep.subr.bf16.mxu0 0
    %200 = vmatpush1.bf16.msra.mxu0 0
    %201 = vmatprep.subr.bf16.mxu0 0
    %202 = vmatpush1.bf16.msra.mxu0 0
    %203 = vmatprep.subr.bf16.mxu0 0
    %204 = vmatpush1.bf16.msra.mxu0 0
    %205 = vmatprep.mubr.bf16.mxu0 0
    %206 = vmatmul.mubr.bf16.gmra.mrb[0].mxu0 %v171
    %v207 = vpop.f32.mrb[0].mxu0
    %v208 = vadd.f32 0.0, %v207
    %v209 = vpop.f32.mrb[0].mxu0
    %v210 = vpop.f32.mrb[0].mxu0
    %v211 = vpop.f32.mrb[0].mxu0
    %212 = vdwg.mxu0
    %v213 = vadd.f32 %v124, %v208
    %v214 = vxor.u32 %v213, 2147483648
    %v215 = vmul.f32 %v214, 1.442695
    %v216 = vpow.pop %v215
    %v217 = vadd.f32 %v216, 1.0
    %v218 = vrcp.pop %v217
    %v219 = vmul.f32 1.0, %v218
    %v220 = vtanh.pop %v213
    %v221 = vmul.f32 %v219, 0.0
    %223 = vrot.lane.b32.xlu0 %v220, 64
    %v224 = vpop.permute.xlu0 %223
    %v226 = vmul.f32 %v219, %v224
    %228 = vrot.lane.b32.xlu0 %v226, 32
    %v229 = vpop.permute.xlu0 %228
    %v231 = vadd.f32 %v221, %v229
    %v232 = vtanh.pop %v231
    %234 = vrot.lane.b32.xlu0 %v232, 64
    %v235 = vpop.permute.xlu0 %234
    %v237 = vmul.f32 %v219, %v235
    %239 = vrot.lane.b32.xlu0 %v237, 32
    %v240 = vpop.permute.xlu0 %239
    %242 = vst.msk [vmem:[#allocation2] sm:$0xff] %vm76, %v240
    %v243 = vpack.c.bf16 %v237, %v237
    %245 = vrot.lane.b32.xlu0 %v243, 32
    %v246 = vpop.permute.xlu0 %245
    %v248 = vsel %vm76, %v246, 0
    %250 = vmatprep.subr.bf16.mxu0 0
    %251 = vmatpush1.bf16.msra.mxu0 %v166
    %252 = vmatprep.subr.bf16.mxu0 0
    %253 = vmatpush1.bf16.msra.mxu0 %v167
    %254 = vmatprep.subr.bf16.mxu0 0
    %255 = vmatpush1.bf16.msra.mxu0 0
    %256 = vmatprep.subr.bf16.mxu0 0
    %257 = vmatpush1.bf16.msra.mxu0 0
    %258 = vmatprep.subr.bf16.mxu0 0
    %259 = vmatpush1.bf16.msra.mxu0 0
    %260 = vmatprep.subr.bf16.mxu0 0
    %261 = vmatpush1.bf16.msra.mxu0 0
    %262 = vmatprep.subr.bf16.mxu0 0
    %263 = vmatpush1.bf16.msra.mxu0 0
    %264 = vmatprep.subr.bf16.mxu0 0
    %265 = vmatpush1.bf16.msra.mxu0 0
    %266 = vmatprep.subr.bf16.mxu0 0
    %267 = vmatpush1.bf16.msra.mxu0 0
    %268 = vmatprep.subr.bf16.mxu0 0
    %269 = vmatpush1.bf16.msra.mxu0 0
    %270 = vmatprep.subr.bf16.mxu0 0
    %271 = vmatpush1.bf16.msra.mxu0 0
    %272 = vmatprep.subr.bf16.mxu0 0
    %273 = vmatpush1.bf16.msra.mxu0 0
    %274 = vmatprep.subr.bf16.mxu0 0
    %275 = vmatpush1.bf16.msra.mxu0 0
    %276 = vmatprep.subr.bf16.mxu0 0
    %277 = vmatpush1.bf16.msra.mxu0 0
    %278 = vmatprep.subr.bf16.mxu0 0
    %279 = vmatpush1.bf16.msra.mxu0 0
    %280 = vmatprep.subr.bf16.mxu0 0
    %281 = vmatpush1.bf16.msra.mxu0 0
    %282 = vmatprep.mubr.bf16.mxu0 0
    %283 = vmatmul.mubr.bf16.gmra.mrb[0].mxu0 %v248
    %v284 = vpop.f32.mrb[0].mxu0
    %v285 = vadd.f32 0.0, %v284
    %v286 = vpop.f32.mrb[0].mxu0
    %v287 = vpop.f32.mrb[0].mxu0
    %v288 = vpop.f32.mrb[0].mxu0
    %289 = vdwg.mxu0
    %v290 = vadd.f32 %v127, %v285
    %v291 = vxor.u32 %v290, 2147483648
    %v292 = vmul.f32 %v291, 1.442695
    %v293 = vpow.pop %v292
    %v294 = vadd.f32 %v293, 1.0
    %v295 = vrcp.pop %v294
    %v296 = vmul.f32 1.0, %v295
    %v297 = vtanh.pop %v290
    %v298 = vmul.f32 %v296, %v231
    %300 = vrot.lane.b32.xlu0 %v297, 64
    %v301 = vpop.permute.xlu0 %300
    %v303 = vmul.f32 %v296, %v301
    %305 = vrot.lane.b32.xlu0 %v303, 32
    %v306 = vpop.permute.xlu0 %305
    %v308 = vadd.f32 %v298, %v306
    %v309 = vtanh.pop %v308
    %311 = vrot.lane.b32.xlu0 %v309, 64
    %v312 = vpop.permute.xlu0 %311
    %v314 = vmul.f32 %v296, %v312
    %316 = vrot.lane.b32.xlu0 %v314, 32
    %v317 = vpop.permute.xlu0 %316
    %319 = vst.msk [vmem:[#allocation2 + $0x8] sm:$0xff] %vm76, %v317
    %v320 = vpack.c.bf16 %v314, %v314
    %322 = vrot.lane.b32.xlu0 %v320, 32
    %v323 = vpop.permute.xlu0 %322
    %v325 = vsel %vm76, %v323, 0
    %327 = vmatprep.subr.bf16.mxu0 0
    %328 = vmatpush1.bf16.msra.mxu0 %v166
    %329 = vmatprep.subr.bf16.mxu0 0
    %330 = vmatpush1.bf16.msra.mxu0 %v167
    %331 = vmatprep.subr.bf16.mxu0 0
    %332 = vmatpush1.bf16.msra.mxu0 0
    %333 = vmatprep.subr.bf16.mxu0 0
    %334 = vmatpush1.bf16.msra.mxu0 0
    %335 = vmatprep.subr.bf16.mxu0 0
    %336 = vmatpush1.bf16.msra.mxu0 0
    %337 = vmatprep.subr.bf16.mxu0 0
    %338 = vmatpush1.bf16.msra.mxu0 0
    %339 = vmatprep.subr.bf16.mxu0 0
    %340 = vmatpush1.bf16.msra.mxu0 0
    %341 = vmatprep.subr.bf16.mxu0 0
    %342 = vmatpush1.bf16.msra.mxu0 0
    %343 = vmatprep.subr.bf16.mxu0 0
    %344 = vmatpush1.bf16.msra.mxu0 0
    %345 = vmatprep.subr.bf16.mxu0 0
    %346 = vmatpush1.bf16.msra.mxu0 0
    %347 = vmatprep.subr.bf16.mxu0 0
    %348 = vmatpush1.bf16.msra.mxu0 0
    %349 = vmatprep.subr.bf16.mxu0 0
    %350 = vmatpush1.bf16.msra.mxu0 0
    %351 = vmatprep.subr.bf16.mxu0 0
    %352 = vmatpush1.bf16.msra.mxu0 0
    %353 = vmatprep.subr.bf16.mxu0 0
    %354 = vmatpush1.bf16.msra.mxu0 0
    %355 = vmatprep.subr.bf16.mxu0 0
    %356 = vmatpush1.bf16.msra.mxu0 0
    %357 = vmatprep.subr.bf16.mxu0 0
    %358 = vmatpush1.bf16.msra.mxu0 0
    %359 = vmatprep.mubr.bf16.mxu0 0
    %360 = vmatmul.mubr.bf16.gmra.mrb[0].mxu0 %v325
    %v361 = vpop.f32.mrb[0].mxu0
    %v362 = vadd.f32 0.0, %v361
    %v363 = vpop.f32.mrb[0].mxu0
    %v364 = vpop.f32.mrb[0].mxu0
    %v365 = vpop.f32.mrb[0].mxu0
    %366 = vdwg.mxu0
    %v367 = vadd.f32 %v132, %v362
    %v368 = vxor.u32 %v367, 2147483648
    %v369 = vmul.f32 %v368, 1.442695
    %v370 = vpow.pop %v369
    %v371 = vadd.f32 %v370, 1.0
    %v372 = vrcp.pop %v371
    %v373 = vmul.f32 1.0, %v372
    %v374 = vtanh.pop %v367
    %v375 = vmul.f32 %v373, %v308
    %377 = vrot.lane.b32.xlu0 %v374, 64
    %v378 = vpop.permute.xlu0 %377
    %v380 = vmul.f32 %v373, %v378
    %382 = vrot.lane.b32.xlu0 %v380, 32
    %v383 = vpop.permute.xlu0 %382
    %v385 = vadd.f32 %v375, %v383
    %v386 = vtanh.pop %v385
    %388 = vrot.lane.b32.xlu0 %v386, 64
    %v389 = vpop.permute.xlu0 %388
    %v391 = vmul.f32 %v373, %v389
    %393 = vrot.lane.b32.xlu0 %v391, 32
    %v394 = vpop.permute.xlu0 %393
    %396 = vst.msk [vmem:[#allocation2 + $0x10] sm:$0xff] %vm76, %v394
    %v397 = vpack.c.bf16 %v391, %v391
    %399 = vrot.lane.b32.xlu0 %v397, 32
    %v400 = vpop.permute.xlu0 %399
    %v402 = vsel %vm76, %v400, 0
    %404 = vmatprep.subr.bf16.mxu0 0
    %405 = vmatpush1.bf16.msra.mxu0 %v166
    %406 = vmatprep.subr.bf16.mxu0 0
    %407 = vmatpush1.bf16.msra.mxu0 %v167
    %408 = vmatprep.subr.bf16.mxu0 0
    %409 = vmatpush1.bf16.msra.mxu0 0
    %410 = vmatprep.subr.bf16.mxu0 0
    %411 = vmatpush1.bf16.msra.mxu0 0
    %412 = vmatprep.subr.bf16.mxu0 0
    %413 = vmatpush1.bf16.msra.mxu0 0
    %414 = vmatprep.subr.bf16.mxu0 0
    %415 = vmatpush1.bf16.msra.mxu0 0
    %416 = vmatprep.subr.bf16.mxu0 0
    %417 = vmatpush1.bf16.msra.mxu0 0
    %418 = vmatprep.subr.bf16.mxu0 0
    %419 = vmatpush1.bf16.msra.mxu0 0
    %420 = vmatprep.subr.bf16.mxu0 0
    %421 = vmatpush1.bf16.msra.mxu0 0
    %422 = vmatprep.subr.bf16.mxu0 0
    %423 = vmatpush1.bf16.msra.mxu0 0
    %424 = vmatprep.subr.bf16.mxu0 0
    %425 = vmatpush1.bf16.msra.mxu0 0
    %426 = vmatprep.subr.bf16.mxu0 0
    %427 = vmatpush1.bf16.msra.mxu0 0
    %428 = vmatprep.subr.bf16.mxu0 0
    %429 = vmatpush1.bf16.msra.mxu0 0
    %430 = vmatprep.subr.bf16.mxu0 0
    %431 = vmatpush1.bf16.msra.mxu0 0
    %432 = vmatprep.subr.bf16.mxu0 0
    %433 = vmatpush1.bf16.msra.mxu0 0
    %434 = vmatprep.subr.bf16.mxu0 0
    %435 = vmatpush1.bf16.msra.mxu0 0
    %436 = vmatprep.mubr.bf16.mxu0 0
    %437 = vmatmul.mubr.bf16.gmra.mrb[0].mxu0 %v402
    %v438 = vpop.f32.mrb[0].mxu0
    %v439 = vadd.f32 0.0, %v438
    %v440 = vpop.f32.mrb[0].mxu0
    %v441 = vpop.f32.mrb[0].mxu0
    %v442 = vpop.f32.mrb[0].mxu0
    %443 = vdwg.mxu0
    %v444 = vadd.f32 %v135, %v439
    %v445 = vxor.u32 %v444, 2147483648
    %v446 = vmul.f32 %v445, 1.442695
    %v447 = vpow.pop %v446
    %v448 = vadd.f32 %v447, 1.0
    %v449 = vrcp.pop %v448
    %v450 = vmul.f32 1.0, %v449
    %v451 = vtanh.pop %v444
    %v452 = vmul.f32 %v450, %v385
    %454 = vrot.lane.b32.xlu0 %v451, 64
    %v455 = vpop.permute.xlu0 %454
    %v457 = vmul.f32 %v450, %v455
    %459 = vrot.lane.b32.xlu0 %v457, 32
    %v460 = vpop.permute.xlu0 %459
    %v462 = vadd.f32 %v452, %v460
    %v463 = vtanh.pop %v462
    %465 = vrot.lane.b32.xlu0 %v463, 64
    %v466 = vpop.permute.xlu0 %465
    %v468 = vmul.f32 %v450, %v466
    %470 = vrot.lane.b32.xlu0 %v468, 32
    %v471 = vpop.permute.xlu0 %470
    %473 = vst.msk [vmem:[#allocation2 + $0x18] sm:$0xff] %vm76, %v471
    %v474 = vpack.c.bf16 %v468, %v468
    %476 = vrot.lane.b32.xlu0 %v474, 32
    %v477 = vpop.permute.xlu0 %476
    %v479 = vsel %vm76, %v477, 0
    %481 = vmatprep.subr.bf16.mxu0 0
    %482 = vmatpush1.bf16.msra.mxu0 %v166
    %483 = vmatprep.subr.bf16.mxu0 0
    %484 = vmatpush1.bf16.msra.mxu0 %v167
    %485 = vmatprep.subr.bf16.mxu0 0
    %486 = vmatpush1.bf16.msra.mxu0 0
    %487 = vmatprep.subr.bf16.mxu0 0
    %488 = vmatpush1.bf16.msra.mxu0 0
    %489 = vmatprep.subr.bf16.mxu0 0
    %490 = vmatpush1.bf16.msra.mxu0 0
    %491 = vmatprep.subr.bf16.mxu0 0
    %492 = vmatpush1.bf16.msra.mxu0 0
    %493 = vmatprep.subr.bf16.mxu0 0
    %494 = vmatpush1.bf16.msra.mxu0 0
    %495 = vmatprep.subr.bf16.mxu0 0
    %496 = vmatpush1.bf16.msra.mxu0 0
    %497 = vmatprep.subr.bf16.mxu0 0
    %498 = vmatpush1.bf16.msra.mxu0 0
    %499 = vmatprep.subr.bf16.mxu0 0
    %500 = vmatpush1.bf16.msra.mxu0 0
    %501 = vmatprep.subr.bf16.mxu0 0
    %502 = vmatpush1.bf16.msra.mxu0 0
    %503 = vmatprep.subr.bf16.mxu0 0
    %504 = vmatpush1.bf16.msra.mxu0 0
    %505 = vmatprep.subr.bf16.mxu0 0
    %506 = vmatpush1.bf16.msra.mxu0 0
    %507 = vmatprep.subr.bf16.mxu0 0
    %508 = vmatpush1.bf16.msra.mxu0 0
    %509 = vmatprep.subr.bf16.mxu0 0
    %510 = vmatpush1.bf16.msra.mxu0 0
    %511 = vmatprep.subr.bf16.mxu0 0
    %512 = vmatpush1.bf16.msra.mxu0 0
    %513 = vmatprep.mubr.bf16.mxu0 0
    %514 = vmatmul.mubr.bf16.gmra.mrb[0].mxu0 %v479
    %v515 = vpop.f32.mrb[0].mxu0
    %v516 = vadd.f32 0.0, %v515
    %v517 = vpop.f32.mrb[0].mxu0
    %v518 = vpop.f32.mrb[0].mxu0
    %v519 = vpop.f32.mrb[0].mxu0
    %520 = vdwg.mxu0
    %v521 = vadd.f32 %v140, %v516
    %v522 = vxor.u32 %v521, 2147483648
    %v523 = vmul.f32 %v522, 1.442695
    %v524 = vpow.pop %v523
    %v525 = vadd.f32 %v524, 1.0
    %v526 = vrcp.pop %v525
    %v527 = vmul.f32 1.0, %v526
    %v528 = vtanh.pop %v521
    %v529 = vmul.f32 %v527, %v462
    %531 = vrot.lane.b32.xlu0 %v528, 64
    %v532 = vpop.permute.xlu0 %531
    %v534 = vmul.f32 %v527, %v532
    %536 = vrot.lane.b32.xlu0 %v534, 32
    %v537 = vpop.permute.xlu0 %536
    %v539 = vadd.f32 %v529, %v537
    %v540 = vtanh.pop %v539
    %542 = vrot.lane.b32.xlu0 %v540, 64
    %v543 = vpop.permute.xlu0 %542
    %v545 = vmul.f32 %v527, %v543
    %547 = vrot.lane.b32.xlu0 %v545, 32
    %v548 = vpop.permute.xlu0 %547
    %550 = vst.msk [vmem:[#allocation2 + $0x20] sm:$0xff] %vm76, %v548
    %v551 = vpack.c.bf16 %v545, %v545
    %553 = vrot.lane.b32.xlu0 %v551, 32
    %v554 = vpop.permute.xlu0 %553
    %v556 = vsel %vm76, %v554, 0
    %558 = vmatprep.subr.bf16.mxu0 0
    %559 = vmatpush1.bf16.msra.mxu0 %v166
    %560 = vmatprep.subr.bf16.mxu0 0
    %561 = vmatpush1.bf16.msra.mxu0 %v167
    %562 = vmatprep.subr.bf16.mxu0 0
    %563 = vmatpush1.bf16.msra.mxu0 0
    %564 = vmatprep.subr.bf16.mxu0 0
    %565 = vmatpush1.bf16.msra.mxu0 0
    %566 = vmatprep.subr.bf16.mxu0 0
    %567 = vmatpush1.bf16.msra.mxu0 0
    %568 = vmatprep.subr.bf16.mxu0 0
    %569 = vmatpush1.bf16.msra.mxu0 0
    %570 = vmatprep.subr.bf16.mxu0 0
    %571 = vmatpush1.bf16.msra.mxu0 0
    %572 = vmatprep.subr.bf16.mxu0 0
    %573 = vmatpush1.bf16.msra.mxu0 0
    %574 = vmatprep.subr.bf16.mxu0 0
    %575 = vmatpush1.bf16.msra.mxu0 0
    %576 = vmatprep.subr.bf16.mxu0 0
    %577 = vmatpush1.bf16.msra.mxu0 0
    %578 = vmatprep.subr.bf16.mxu0 0
    %579 = vmatpush1.bf16.msra.mxu0 0
    %580 = vmatprep.subr.bf16.mxu0 0
    %581 = vmatpush1.bf16.msra.mxu0 0
    %582 = vmatprep.subr.bf16.mxu0 0
    %583 = vmatpush1.bf16.msra.mxu0 0
    %584 = vmatprep.subr.bf16.mxu0 0
    %585 = vmatpush1.bf16.msra.mxu0 0
    %586 = vmatprep.subr.bf16.mxu0 0
    %587 = vmatpush1.bf16.msra.mxu0 0
    %588 = vmatprep.subr.bf16.mxu0 0
    %589 = vmatpush1.bf16.msra.mxu0 0
    %590 = vmatprep.mubr.bf16.mxu0 0
    %591 = vmatmul.mubr.bf16.gmra.mrb[0].mxu0 %v556
    %v592 = vpop.f32.mrb[0].mxu0
    %v593 = vadd.f32 0.0, %v592
    %v594 = vpop.f32.mrb[0].mxu0
    %v595 = vpop.f32.mrb[0].mxu0
    %v596 = vpop.f32.mrb[0].mxu0
    %597 = vdwg.mxu0
    %v598 = vadd.f32 %v143, %v593
    %v599 = vxor.u32 %v598, 2147483648
    %v600 = vmul.f32 %v599, 1.442695
    %v601 = vpow.pop %v600
    %v602 = vadd.f32 %v601, 1.0
    %v603 = vrcp.pop %v602
    %v604 = vmul.f32 1.0, %v603
    %v605 = vtanh.pop %v598
    %v606 = vmul.f32 %v604, %v539
    %608 = vrot.lane.b32.xlu0 %v605, 64
    %v609 = vpop.permute.xlu0 %608
    %v611 = vmul.f32 %v604, %v609
    %613 = vrot.lane.b32.xlu0 %v611, 32
    %v614 = vpop.permute.xlu0 %613
    %v616 = vadd.f32 %v606, %v614
    %v617 = vtanh.pop %v616
    %619 = vrot.lane.b32.xlu0 %v617, 64
    %v620 = vpop.permute.xlu0 %619
    %v622 = vmul.f32 %v604, %v620
    %624 = vrot.lane.b32.xlu0 %v622, 32
    %v625 = vpop.permute.xlu0 %624
    %627 = vst.msk [vmem:[#allocation2 + $0x28] sm:$0xff] %vm76, %v625
    %v628 = vpack.c.bf16 %v622, %v622
    %630 = vrot.lane.b32.xlu0 %v628, 32
    %v631 = vpop.permute.xlu0 %630
    %v633 = vsel %vm76, %v631, 0
    %635 = vmatprep.subr.bf16.mxu0 0
    %636 = vmatpush1.bf16.msra.mxu0 %v166
    %637 = vmatprep.subr.bf16.mxu0 0
    %638 = vmatpush1.bf16.msra.mxu0 %v167
    %639 = vmatprep.subr.bf16.mxu0 0
    %640 = vmatpush1.bf16.msra.mxu0 0
    %641 = vmatprep.subr.bf16.mxu0 0
    %642 = vmatpush1.bf16.msra.mxu0 0
    %643 = vmatprep.subr.bf16.mxu0 0
    %644 = vmatpush1.bf16.msra.mxu0 0
    %645 = vmatprep.subr.bf16.mxu0 0
    %646 = vmatpush1.bf16.msra.mxu0 0
    %647 = vmatprep.subr.bf16.mxu0 0
    %648 = vmatpush1.bf16.msra.mxu0 0
    %649 = vmatprep.subr.bf16.mxu0 0
    %650 = vmatpush1.bf16.msra.mxu0 0
    %651 = vmatprep.subr.bf16.mxu0 0
    %652 = vmatpush1.bf16.msra.mxu0 0
    %653 = vmatprep.subr.bf16.mxu0 0
    %654 = vmatpush1.bf16.msra.mxu0 0
    %655 = vmatprep.subr.bf16.mxu0 0
    %656 = vmatpush1.bf16.msra.mxu0 0
    %657 = vmatprep.subr.bf16.mxu0 0
    %658 = vmatpush1.bf16.msra.mxu0 0
    %659 = vmatprep.subr.bf16.mxu0 0
    %660 = vmatpush1.bf16.msra.mxu0 0
    %661 = vmatprep.subr.bf16.mxu0 0
    %662 = vmatpush1.bf16.msra.mxu0 0
    %663 = vmatprep.subr.bf16.mxu0 0
    %664 = vmatpush1.bf16.msra.mxu0 0
    %665 = vmatprep.subr.bf16.mxu0 0
    %666 = vmatpush1.bf16.msra.mxu0 0
    %667 = vmatprep.mubr.bf16.mxu0 0
    %668 = vmatmul.mubr.bf16.gmra.mrb[0].mxu0 %v633
    %v669 = vpop.f32.mrb[0].mxu0
    %v670 = vadd.f32 0.0, %v669
    %v671 = vpop.f32.mrb[0].mxu0
    %v672 = vpop.f32.mrb[0].mxu0
    %v673 = vpop.f32.mrb[0].mxu0
    %674 = vdwg.mxu0
    %v675 = vadd.f32 %v148, %v670
    %v676 = vxor.u32 %v675, 2147483648
    %v677 = vmul.f32 %v676, 1.442695
    %v678 = vpow.pop %v677
    %v679 = vadd.f32 %v678, 1.0
    %v680 = vrcp.pop %v679
    %v681 = vmul.f32 1.0, %v680
    %v682 = vtanh.pop %v675
    %v683 = vmul.f32 %v681, %v616
    %685 = vrot.lane.b32.xlu0 %v682, 64
    %v686 = vpop.permute.xlu0 %685
    %v688 = vmul.f32 %v681, %v686
    %690 = vrot.lane.b32.xlu0 %v688, 32
    %v691 = vpop.permute.xlu0 %690
    %v693 = vadd.f32 %v683, %v691
    %v694 = vtanh.pop %v693
    %696 = vrot.lane.b32.xlu0 %v694, 64
    %v697 = vpop.permute.xlu0 %696
    %v699 = vmul.f32 %v681, %v697
    %701 = vrot.lane.b32.xlu0 %v699, 32
    %v702 = vpop.permute.xlu0 %701
    %704 = vst.msk [vmem:[#allocation2 + $0x30] sm:$0xff] %vm76, %v702
    %v705 = vpack.c.bf16 %v699, %v699
    %707 = vrot.lane.b32.xlu0 %v705, 32
    %v708 = vpop.permute.xlu0 %707
    %v710 = vsel %vm76, %v708, 0
    %712 = vmatprep.subr.bf16.mxu0 0
    %713 = vmatpush1.bf16.msra.mxu0 %v166
    %714 = vmatprep.subr.bf16.mxu0 0
    %715 = vmatpush1.bf16.msra.mxu0 %v167
    %716 = vmatprep.subr.bf16.mxu0 0
    %717 = vmatpush1.bf16.msra.mxu0 0
    %718 = vmatprep.subr.bf16.mxu0 0
    %719 = vmatpush1.bf16.msra.mxu0 0
    %720 = vmatprep.subr.bf16.mxu0 0
    %721 = vmatpush1.bf16.msra.mxu0 0
    %722 = vmatprep.subr.bf16.mxu0 0
    %723 = vmatpush1.bf16.msra.mxu0 0
    %724 = vmatprep.subr.bf16.mxu0 0
    %725 = vmatpush1.bf16.msra.mxu0 0
    %726 = vmatprep.subr.bf16.mxu0 0
    %727 = vmatpush1.bf16.msra.mxu0 0
    %728 = vmatprep.subr.bf16.mxu0 0
    %729 = vmatpush1.bf16.msra.mxu0 0
    %730 = vmatprep.subr.bf16.mxu0 0
    %731 = vmatpush1.bf16.msra.mxu0 0
    %732 = vmatprep.subr.bf16.mxu0 0
    %733 = vmatpush1.bf16.msra.mxu0 0
    %734 = vmatprep.subr.bf16.mxu0 0
    %735 = vmatpush1.bf16.msra.mxu0 0
    %736 = vmatprep.subr.bf16.mxu0 0
    %737 = vmatpush1.bf16.msra.mxu0 0
    %738 = vmatprep.subr.bf16.mxu0 0
    %739 = vmatpush1.bf16.msra.mxu0 0
    %740 = vmatprep.subr.bf16.mxu0 0
    %741 = vmatpush1.bf16.msra.mxu0 0
    %742 = vmatprep.subr.bf16.mxu0 0
    %743 = vmatpush1.bf16.msra.mxu0 0
    %744 = vmatprep.mubr.bf16.mxu0 0
    %745 = vmatmul.mubr.bf16.gmra.mrb[0].mxu0 %v710
    %v746 = vpop.f32.mrb[0].mxu0
    %v747 = vadd.f32 0.0, %v746
    %v748 = vpop.f32.mrb[0].mxu0
    %v749 = vpop.f32.mrb[0].mxu0
    %v750 = vpop.f32.mrb[0].mxu0
    %751 = vdwg.mxu0
    %v752 = vadd.f32 %v151, %v747
    %v753 = vxor.u32 %v752, 2147483648
    %v754 = vmul.f32 %v753, 1.442695
    %v755 = vpow.pop %v754
    %v756 = vadd.f32 %v755, 1.0
    %v757 = vrcp.pop %v756
    %v758 = vmul.f32 1.0, %v757
    %v759 = vtanh.pop %v752
    %v760 = vmul.f32 %v758, %v693
    %762 = vrot.lane.b32.xlu0 %v759, 64
    %v763 = vpop.permute.xlu0 %762
    %v765 = vmul.f32 %v758, %v763
    %767 = vrot.lane.b32.xlu0 %v765, 32
    %v768 = vpop.permute.xlu0 %767
    %v770 = vadd.f32 %v760, %v768
    %v771 = vtanh.pop %v770
    %773 = vrot.lane.b32.xlu0 %v771, 64
    %v774 = vpop.permute.xlu0 %773
    %v776 = vmul.f32 %v758, %v774
    %778 = vrot.lane.b32.xlu0 %v776, 32
    %v779 = vpop.permute.xlu0 %778
    %781 = vst.msk [vmem:[#allocation2 + $0x38] sm:$0xff] %vm76, %v779
    %v782 = vld [vmem:[#allocation2] sm:$0xff]
    %v783 = vld [vmem:[#allocation2 + $0x8] sm:$0xff]
    %v784 = vld [vmem:[#allocation2 + $0x10] sm:$0xff]
    %v785 = vld [vmem:[#allocation2 + $0x18] sm:$0xff]
    %v786 = vld [vmem:[#allocation2 + $0x20] sm:$0xff]
    %v787 = vld [vmem:[#allocation2 + $0x28] sm:$0xff]
    %v788 = vld [vmem:[#allocation2 + $0x30] sm:$0xff]
    %v789 = vld [vmem:[#allocation2 + $0x38] sm:$0xff]
    %v790 = vpack.c.bf16 %v783, %v782
    %v791 = vpack.c.bf16 %v785, %v784
    %v792 = vpack.c.bf16 %v787, %v786
    %v793 = vpack.c.bf16 %v789, %v788
    %v794 = vld [vmem:[%s4] sm:$0xf]
    %v795 = vld [vmem:[%s4 + $0x4] sm:$0xf]
    %v796 = vld [vmem:[%s4 + $0x8] sm:$0xf]
    %v797 = vld [vmem:[%s4 + $0xc] sm:$0xf]
    %v798 = vld [vmem:[%s5] sm:$0x1]
    %v800 = vlaneseq
    %v801 = vshrl.u32 %v800, 7
    %v802 = vsub.s32 0, %v801
    %v803 = vrot.slane %v798, %v802
    %v809 = vunpack.c.l.b16 %v794
    %v810 = vunpack.c.l.b16 %v795
    %v811 = vunpack.c.l.b16 %v796
    %v812 = vunpack.c.l.b16 %v797
    %v813 = vpack.c.b16 %v810, %v809
    %v814 = vpack.c.b16 %v812, %v811
    %v818 = vsel %vm76, %v790, 0
    %v821 = vsel %vm76, %v791, 0
    %v824 = vsel %vm76, %v792, 0
    %v827 = vsel %vm76, %v793, 0
    %829 = vmatprep.subr.bf16.mxu0 0
    %830 = vmatpush1.bf16.msra.mxu0 %v813
    %831 = vmatprep.subr.bf16.mxu0 0
    %832 = vmatpush1.bf16.msra.mxu0 %v814
    %833 = vmatprep.subr.bf16.mxu0 0
    %834 = vmatpush1.bf16.msra.mxu0 0
    %835 = vmatprep.subr.bf16.mxu0 0
    %836 = vmatpush1.bf16.msra.mxu0 0
    %837 = vmatprep.subr.bf16.mxu0 0
    %838 = vmatpush1.bf16.msra.mxu0 0
    %839 = vmatprep.subr.bf16.mxu0 0
    %840 = vmatpush1.bf16.msra.mxu0 0
    %841 = vmatprep.subr.bf16.mxu0 0
    %842 = vmatpush1.bf16.msra.mxu0 0
    %843 = vmatprep.subr.bf16.mxu0 0
    %844 = vmatpush1.bf16.msra.mxu0 0
    %845 = vmatprep.subr.bf16.mxu0 0
    %846 = vmatpush1.bf16.msra.mxu0 0
    %847 = vmatprep.subr.bf16.mxu0 0
    %848 = vmatpush1.bf16.msra.mxu0 0
    %849 = vmatprep.subr.bf16.mxu0 0
    %850 = vmatpush1.bf16.msra.mxu0 0
    %851 = vmatprep.subr.bf16.mxu0 0
    %852 = vmatpush1.bf16.msra.mxu0 0
    %853 = vmatprep.subr.bf16.mxu0 0
    %854 = vmatpush1.bf16.msra.mxu0 0
    %855 = vmatprep.subr.bf16.mxu0 0
    %856 = vmatpush1.bf16.msra.mxu0 0
    %857 = vmatprep.subr.bf16.mxu0 0
    %858 = vmatpush1.bf16.msra.mxu0 0
    %859 = vmatprep.subr.bf16.mxu0 0
    %860 = vmatpush1.bf16.msra.mxu0 0
    %861 = vmatprep.mubr.bf16.mxu0 0
    %862 = vmatmul.mubr.bf16.gmra.mrb[0].mxu0 %v818
    %v863 = vpop.f32.mrb[0].mxu0
    %v864 = vadd.f32 %v803, %v863
    %v865 = vpop.f32.mrb[0].mxu0
    %v866 = vpop.f32.mrb[0].mxu0
    %v867 = vadd.f32 %v803, %v866
    %v868 = vpop.f32.mrb[0].mxu0
    %869 = vmatprep.mubr.bf16.mxu0 0
    %870 = vmatmul.mubr.bf16.gmra.mrb[0].mxu0 %v821
    %v871 = vpop.f32.mrb[0].mxu0
    %v872 = vadd.f32 %v803, %v871
    %v873 = vpop.f32.mrb[0].mxu0
    %v874 = vpop.f32.mrb[0].mxu0
    %v875 = vadd.f32 %v803, %v874
    %v876 = vpop.f32.mrb[0].mxu0
    %877 = vmatprep.mubr.bf16.mxu0 0
    %878 = vmatmul.mubr.bf16.gmra.mrb[0].mxu0 %v824
    %v879 = vpop.f32.mrb[0].mxu0
    %v880 = vadd.f32 %v803, %v879
    %v881 = vpop.f32.mrb[0].mxu0
    %v882 = vpop.f32.mrb[0].mxu0
    %v883 = vadd.f32 %v803, %v882
    %v884 = vpop.f32.mrb[0].mxu0
    %885 = vmatprep.mubr.bf16.mxu0 0
    %886 = vmatmul.mubr.bf16.gmra.mrb[0].mxu0 %v827
    %v887 = vpop.f32.mrb[0].mxu0
    %v888 = vadd.f32 %v803, %v887
    %v889 = vpop.f32.mrb[0].mxu0
    %v890 = vpop.f32.mrb[0].mxu0
    %v891 = vadd.f32 %v803, %v890
    %v892 = vpop.f32.mrb[0].mxu0
    %893 = vdwg.mxu0
    %894 = vst [vmem:[#allocation3] sm:$0xff] %v864
    %895 = vst [vmem:[#allocation3 + $0x8] sm:$0xff] %v867
    %896 = vst [vmem:[#allocation3 + $0x10] sm:$0xff] %v872
    %897 = vst [vmem:[#allocation3 + $0x18] sm:$0xff] %v875
    %898 = vst [vmem:[#allocation3 + $0x20] sm:$0xff] %v880
    %899 = vst [vmem:[#allocation3 + $0x28] sm:$0xff] %v883
    %900 = vst [vmem:[#allocation3 + $0x30] sm:$0xff] %v888
    %901 = vst [vmem:[#allocation3 + $0x38] sm:$0xff] %v891
    // Predicated region
    $region26: #{tpu_custom_call.1} parent=1 // pred_check
      _
    $region27: #{tpu_custom_call.1} parent=1 // pred_check_branch
      %903 = sbr.rel (0) target = $region29
    $region28: #{tpu_custom_call.1} parent=1 // pred_region
      %s905 = ssub.s32 1024, 1024
      %906 = vsyncadd [#allocation4], %s905
      %s907 = sshll.u32 [#allocation3], 4
      %s908 = int_to_ptr.vmem [resolvable:$true] %s907
      %913 = dma.vmem_to_hbm [thread:$0]  %s908, 1024, %s6, [#allocation4], 128, 128, 8
    $region29: #{tpu_custom_call.1} parent=1 // pred_fallthru
      _
    // Predicated region
    $region30: #{tpu_custom_call.1} parent=1 // pred_check
      _
    $region31: #{tpu_custom_call.1} parent=1 // pred_check_branch
      %915 = sbr.rel (0) target = $region33
    $region32: #{tpu_custom_call.1} parent=1 // pred_region
      %916 = dma.done [#allocation4], 1024
    $region33: #{tpu_custom_call.1} parent=1 // pred_fallthru
      _
    %917 = vsyncpa [#allocation4], 1

</llo_original>
